<compile_context>
chip_gen: v7x
topology: tpu7x:2x2x1
jax: 0.10.0
libtpu: 0.0.40
codegen_flags: <defaults>
</compile_context>

<pallas_src>
import functools

import jax
import jax.numpy as jnp
from jax.experimental import pallas as pl
from jax.experimental.pallas import tpu as pltpu


def _round_up(x, m):
    return (x + m - 1) // m * m


def _matern12_kernel(x_ref, g_ref, w_ref, o_ref, acc_ref, *, inv_scale):
    # x_ref:   (BBLK, KBLK)   expanded x (feature repeated G times along lanes)
    # g_ref:   (1,    KBLK)   grid tiled across features
    # w_ref:   (KBLK, OUTBLK) flat spline weight slice
    # o_ref:   (BBLK, OUTBLK)
    # acc_ref: (BBLK, OUTBLK) f32 accumulator, resident across the K axis
    k = pl.program_id(2)

    @pl.when(k == 0)
    def _init():
        acc_ref[...] = jnp.zeros_like(acc_ref)

    # Lane-dense basis: full-width VPU abs/sub/mul, one EUP exp push per element.
    basis = jnp.exp(-jnp.abs(x_ref[...] - g_ref[...]) * inv_scale)  # (BBLK, KBLK)

    # Single deep-K MXU matmul per step, f32 accumulation.
    acc_ref[...] += jnp.dot(basis, w_ref[...], preferred_element_type=jnp.float32)

    @pl.when(k == pl.num_programs(2) - 1)
    def _finalize():
        o_ref[...] = acc_ref[...].astype(o_ref.dtype)


def matern12_forward(x, grid, spline_weight, grid_min, grid_max, num_grids):
    """x: (B, F) f32; grid: (G,) f32; spline_weight: (F*G, OUT) f32 -> (B, OUT) f32."""
    B, F = x.shape
    G = num_grids
    K = F * G
    OUT = spline_weight.shape[1]
    scale = (grid_max - grid_min) / (num_grids - 1)
    inv_scale = 1.0 / scale

    # Layout plumbing (outside the kernel): lane-dense expanded operands.
    #   x_exp[b, f*G + g] = x[b, f]
    #   g_exp[0, f*G + g] = grid[g]
    x_exp = jnp.broadcast_to(x[:, :, None], (B, F, G)).reshape(B, K)
    g_exp = jnp.tile(grid, F).reshape(1, K)

    # Tile sizes: lane-dense (multiples of 128) on K and OUT, sublane-aligned B.
    BBLK = min(_round_up(B, 8), 256)
    B_pad = _round_up(B, BBLK)
    KBLK = min(_round_up(K, 128), 512)
    K_pad = _round_up(K, KBLK)
    OUTBLK = min(_round_up(OUT, 128), 512)
    OUT_pad = _round_up(OUT, OUTBLK)

    # Zero-pad.  Padded weight rows/cols are zero, so padded K / OUT positions
    # contribute nothing; padded batch rows are sliced off below.
    x_p = jnp.zeros((B_pad, K_pad), x.dtype).at[:B, :K].set(x_exp)
    g_p = jnp.zeros((1, K_pad), grid.dtype).at[:, :K].set(g_exp)
    w_p = jnp.zeros((K_pad, OUT_pad), spline_weight.dtype).at[:K, :OUT].set(
        spline_weight
    )

    n_b = B_pad // BBLK
    n_o = OUT_pad // OUTBLK
    n_k = K_pad // KBLK

    kernel = functools.partial(_matern12_kernel, inv_scale=inv_scale)

    out_p = pl.pallas_call(
        kernel,
        out_shape=jax.ShapeDtypeStruct((B_pad, OUT_pad), x.dtype),
        grid_spec=pltpu.PrefetchScalarGridSpec(
            num_scalar_prefetch=0,
            grid=(n_b, n_o, n_k),
            in_specs=[
                pl.BlockSpec((BBLK, KBLK), lambda b, o, k: (b, k)),
                pl.BlockSpec((1, KBLK), lambda b, o, k: (0, k)),
                pl.BlockSpec((KBLK, OUTBLK), lambda b, o, k: (k, o)),
            ],
            out_specs=pl.BlockSpec((BBLK, OUTBLK), lambda b, o, k: (b, o)),
            scratch_shapes=[pltpu.VMEM((BBLK, OUTBLK), jnp.float32)],
        ),
        compiler_params=pltpu.CompilerParams(
            # batch / out tiles are independent -> parallel (dual-TC on v7x,
            # megacore on v6e); K is the reduction -> arbitrary, trailing.
            dimension_semantics=("parallel", "parallel", "arbitrary"),
        ),
    )(x_p, g_p, w_p)

    return out_p[:B, :OUT]


def matern12_reference(x, grid, spline_weight, grid_min, grid_max, num_grids):
    scale = (grid_max - grid_min) / (num_grids - 1)
    dist = jnp.abs(x[..., None] - grid)                 # (B, F, G)
    basis = jnp.exp(-dist / scale)
    return basis.reshape(basis.shape[0], -1) @ spline_weight


if __name__ == "__main__":
    # Module hyper-parameters (small, consistent with the forward pass).
    in_features = 8
    out_features = 16
    num_grids = 8
    grid_min = -1.0
    grid_max = 1.0
    spline_scale = 0.1
    batch = 8

    key = jax.random.PRNGKey(0)
    kx, kw = jax.random.split(key)

    # Deterministic parameter init mirroring __init__:
    #   grid = linspace(grid_min, grid_max, num_grids)
    #   spline_weight = randn(in_features * num_grids, out_features) * spline_scale
    grid_param = jnp.linspace(grid_min, grid_max, num_grids, dtype=jnp.float32)
    spline_weight = (
        jax.random.normal(kw, (in_features * num_grids, out_features), dtype=jnp.float32)
        * spline_scale
    )

    x = jax.random.normal(kx, (batch, in_features), dtype=jnp.float32)

    out = matern12_forward(x, grid_param, spline_weight, grid_min, grid_max, num_grids)
    out = jax.block_until_ready(out)

    ref = matern12_reference(x, grid_param, spline_weight, grid_min, grid_max, num_grids)
    assert out.shape == (batch, out_features)
    assert jnp.allclose(out, ref, atol=1e-5, rtol=1e-5), "mismatch vs reference"

    print("KERNEL_OK")
</pallas_src>

<mosaic_0001>
module attributes {stable_mosaic.version = 11 : i64} {
  func.func @_matern12_kernel(%arg0: i32, %arg1: i32, %arg2: i32, %arg3: memref<8x128xf32, #tpu.memory_space<vmem>>, %arg4: memref<1x128xf32, #tpu.memory_space<vmem>>, %arg5: memref<128x128xf32, #tpu.memory_space<vmem>>, %arg6: memref<8x128xf32, #tpu.memory_space<vmem>>, %arg7: memref<8x128xf32, #tpu.memory_space<vmem>>) attributes {dimension_semantics = [#tpu.dimension_semantics<parallel>, #tpu.dimension_semantics<parallel>, #tpu.dimension_semantics<arbitrary>], iteration_bounds = array<i64: 1, 1, 1>, scalar_prefetch = 0 : i64, scratch_operands = 1 : i64, tpu.core_type = #tpu.core_type<tc>, window_params = [{transform_indices = @transform_0, window_bounds = array<i64: 8, 128>}, {transform_indices = @transform_1, window_bounds = array<i64: 1, 128>}, {transform_indices = @transform_2, window_bounds = array<i64: 128, 128>}, {transform_indices = @transform_3, window_bounds = array<i64: 8, 128>}]} {
    %c0_i32 = arith.constant 0 : i32
    %0 = arith.cmpi eq, %arg2, %c0_i32 : i32
    %1 = arith.extui %0 : i1 to i32
    %c0_i32_0 = arith.constant 0 : i32
    %2 = arith.cmpi ne, %1, %c0_i32_0 : i32
    scf.if %2 {
      %cst_14 = arith.constant 0.000000e+00 : f32
      %21 = vector.broadcast %cst_14 : f32 to vector<8x128xf32>
      %c0_15 = arith.constant 0 : index
      %c0_16 = arith.constant 0 : index
      %22 = vector.load %arg7[%c0_15, %c0_16] : memref<8x128xf32, #tpu.memory_space<vmem>>, vector<8x128xf32>
      tpu.vector_store %arg7[%c0_15, %c0_16], %21 {strides = array<i32>} : memref<8x128xf32, #tpu.memory_space<vmem>>, vector<8x128xf32>,
    } else {
    }
    %c0 = arith.constant 0 : index
    %c0_1 = arith.constant 0 : index
    %3 = vector.load %arg3[%c0, %c0_1] : memref<8x128xf32, #tpu.memory_space<vmem>>, vector<8x128xf32>
    %c0_2 = arith.constant 0 : index
    %c0_3 = arith.constant 0 : index
    %4 = vector.load %arg4[%c0_2, %c0_3] : memref<1x128xf32, #tpu.memory_space<vmem>>, vector<1x128xf32>
    %5 = vector.broadcast %4 : vector<1x128xf32> to vector<8x128xf32>
    %6 = arith.subf %3, %5 : vector<8x128xf32>
    %7 = math.absf %6 : vector<8x128xf32>
    %cst = arith.constant 0.000000e+00 : f32
    %8 = vector.broadcast %cst : f32 to vector<8x128xf32>
    %9 = arith.subf %8, %7 : vector<8x128xf32>
    %cst_4 = arith.constant 3.500000e+00 : f32
    %10 = vector.broadcast %cst_4 : f32 to vector<8x128xf32>
    %11 = arith.mulf %9, %10 : vector<8x128xf32>
    %12 = math.exp %11 : vector<8x128xf32>
    %c0_5 = arith.constant 0 : index
    %c0_6 = arith.constant 0 : index
    %13 = vector.load %arg7[%c0_5, %c0_6] : memref<8x128xf32, #tpu.memory_space<vmem>>, vector<8x128xf32>
    %c0_7 = arith.constant 0 : index
    %c0_8 = arith.constant 0 : index
    %14 = vector.load %arg5[%c0_7, %c0_8] : memref<128x128xf32, #tpu.memory_space<vmem>>, vector<128x128xf32>
    %cst_9 = arith.constant dense<0.000000e+00> : vector<8x128xf32>
    %15 = tpu.matmul %12, %14, %cst_9 {dimension_numbers = #tpu.dot_dimension_numbers<[1], [0], [0], [1], [0, 0, 1, 1], [], []>} : vector<8x128xf32>, vector<128x128xf32>, vector<8x128xf32> -> vector<8x128xf32>
    %16 = arith.addf %13, %15 : vector<8x128xf32>
    %c0_10 = arith.constant 0 : index
    %c0_11 = arith.constant 0 : index
    %17 = vector.load %arg7[%c0_10, %c0_11] : memref<8x128xf32, #tpu.memory_space<vmem>>, vector<8x128xf32>
    tpu.vector_store %arg7[%c0_10, %c0_11], %16 {strides = array<i32>} : memref<8x128xf32, #tpu.memory_space<vmem>>, vector<8x128xf32>,
    %c0_i32_12 = arith.constant 0 : i32
    %18 = arith.cmpi eq, %arg2, %c0_i32_12 : i32
    %19 = arith.extui %18 : i1 to i32
    %c0_i32_13 = arith.constant 0 : i32
    %20 = arith.cmpi ne, %19, %c0_i32_13 : i32
    scf.if %20 {
      %c0_14 = arith.constant 0 : index
      %c0_15 = arith.constant 0 : index
      %21 = vector.load %arg7[%c0_14, %c0_15] : memref<8x128xf32, #tpu.memory_space<vmem>>, vector<8x128xf32>
      %c0_16 = arith.constant 0 : index
      %c0_17 = arith.constant 0 : index
      %22 = vector.load %arg6[%c0_16, %c0_17] : memref<8x128xf32, #tpu.memory_space<vmem>>, vector<8x128xf32>
      tpu.vector_store %arg6[%c0_16, %c0_17], %21 {strides = array<i32>} : memref<8x128xf32, #tpu.memory_space<vmem>>, vector<8x128xf32>,
    } else {
    }
    return
  }
  func.func @transform_0(%arg0: i32, %arg1: i32, %arg2: i32) -> (i32, i32) {
    %c0_i32 = arith.constant 0 : i32
    return %arg0, %arg2 : i32, i32
  }
  func.func @transform_1(%arg0: i32, %arg1: i32, %arg2: i32) -> (i32, i32) {
    %c0_i32 = arith.constant 0 : i32
    %c0_i32_0 = arith.constant 0 : i32
    return %c0_i32, %arg2 : i32, i32
  }
  func.func @transform_2(%arg0: i32, %arg1: i32, %arg2: i32) -> (i32, i32) {
    %c0_i32 = arith.constant 0 : i32
    return %arg2, %arg1 : i32, i32
  }
  func.func @transform_3(%arg0: i32, %arg1: i32, %arg2: i32) -> (i32, i32) {
    %c0_i32 = arith.constant 0 : i32
    return %arg0, %arg1 : i32, i32
  }
}

</mosaic_0001>

<llo_original>
// kernel: tpu_custom_call.1
$region0: #{tpu_custom_call.1}
  #allocation0 [shape = 'u32[]', space=smem, size = 0x4, offset = 0x4, fixed_abs, tag = 'smem constant byte address 0x4 - core index']
  #allocation1 [shape = 'u32[144,128]{1,0:T(1,128)}', space=vmem, size = 0x12000, scoped, tag = 'internal scratch']
  #allocation2 [shape = 'f32[8,128]{1,0:T(8,128)}', space=vmem, size = 0x1000, scoped, tag = 'scratch operand']
  %s0 = inlined_call_operand.hbm [shape: f32[8,128], index: 0, kind: input, shape index: {}]
  %s1 = inlined_call_operand.vmem [shape: f32[1,128], index: 1, kind: input, shape index: {}]
  %s2 = inlined_call_operand.hbm [shape: f32[128,128], index: 2, kind: input, shape index: {}]
  %s3 = inlined_call_operand.hbm [shape: f32[8,128], index: 3, kind: output, shape index: {}]
  %s4 = sld [smem:[#allocation0]]
  $region38: #{tpu_custom_call.1} parent=0
    _
  %s6 = ssub.s32 1, %s4
  %s7 = scalar_select 0, %s6, %s4
  $region1: #{tpu_custom_call.1} parent=0
    #allocation3 [shape = 'u8[4096]{0}', space=vmem, size = 0x1000, scoped, tag = 'input window, operand 0, single buffered']
    #allocation4 [shape = 's32[1]{0}', space=sflag, size = 0x4, scoped, tag = 'scoped memory for tpu_custom_call.1']
    #allocation5 [shape = 's32[1]{0}', space=sflag, size = 0x4, scoped, tag = 'scoped memory for tpu_custom_call.1']
    #allocation6 [shape = 'u8[65536]{0}', space=vmem, size = 0x10000, scoped, tag = 'input window, operand 2, single buffered']
    #allocation7 [shape = 's32[1]{0}', space=sflag, size = 0x4, scoped, tag = 'scoped memory for tpu_custom_call.1']
    #allocation8 [shape = 'u8[4096]{0}', space=vmem, size = 0x1000, scoped, tag = 'output window, operand 0, single buffered']
    %8 = vsyncpa [#allocation4], 0
    %9 = vsyncpa [#allocation7], 0
    %10 = vsyncpa [#allocation5], 0
    // Predicated region
    $region2: #{tpu_custom_call.1} parent=1 // pred_check
      _
    $region3: #{tpu_custom_call.1} parent=1 // pred_check_branch
      %12 = sbr.rel (0) target = $region5
    $region4: #{tpu_custom_call.1} parent=1 // pred_region
      %s14 = ssub.s32 128, 128
      %15 = vsyncadd [#allocation4], %s14
      %s17 = sshll.u32 [#allocation3], 4
      %s18 = int_to_ptr.vmem [resolvable:$true] %s17
      %20 = dma.hbm_to_vmem [thread:$0]  %s0, 128, %s18, [#allocation4]
    $region5: #{tpu_custom_call.1} parent=1 // pred_fallthru
      _
    // Predicated region
    $region6: #{tpu_custom_call.1} parent=1 // pred_check
      _
    $region7: #{tpu_custom_call.1} parent=1 // pred_check_branch
      %22 = sbr.rel (0) target = $region9
    $region8: #{tpu_custom_call.1} parent=1 // pred_region
      _
    $region9: #{tpu_custom_call.1} parent=1 // pred_fallthru
      _
    // Predicated region
    $region10: #{tpu_custom_call.1} parent=1 // pred_check
      _
    $region11: #{tpu_custom_call.1} parent=1 // pred_check_branch
      %24 = sbr.rel (0) target = $region13
    $region12: #{tpu_custom_call.1} parent=1 // pred_region
      %s26 = ssub.s32 2048, 2048
      %27 = vsyncadd [#allocation7], %s26
      %s28 = sshll.u32 [#allocation6], 4
      %s29 = int_to_ptr.vmem [resolvable:$true] %s28
      %34 = dma.hbm_to_vmem [thread:$0]  %s2, 2048, %s29, [#allocation7], 128, 128, 8
    $region13: #{tpu_custom_call.1} parent=1 // pred_fallthru
      _
    // Predicated region
    $region14: #{tpu_custom_call.1} parent=1 // pred_check
      _
    $region15: #{tpu_custom_call.1} parent=1 // pred_check_branch
      %36 = sbr.rel (0) target = $region17
    $region16: #{tpu_custom_call.1} parent=1 // pred_region
      %37 = dma.done [#allocation4], 128
    $region17: #{tpu_custom_call.1} parent=1 // pred_fallthru
      _
    // Predicated region
    $region18: #{tpu_custom_call.1} parent=1 // pred_check
      _
    $region19: #{tpu_custom_call.1} parent=1 // pred_check_branch
      %39 = sbr.rel (0) target = $region21
    $region20: #{tpu_custom_call.1} parent=1 // pred_region
      %40 = dma.done [#allocation7], 2048
    $region21: #{tpu_custom_call.1} parent=1 // pred_fallthru
      _
    %p41 = scmp.eq.s32.totalorder 0, 0
    // Predicated region
    $region22: #{tpu_custom_call.1} parent=1 // pred_check
      %p42 = pneg %p41
    $region23: #{tpu_custom_call.1} parent=1 // pred_check_branch
      %44 = sbr.rel (%p42) target = $region25
    $region24: #{tpu_custom_call.1} parent=1 // pred_region
      %45 = vst [vmem:[#allocation2] sm:$0xff] 0.0
    $region25: #{tpu_custom_call.1} parent=1 // pred_fallthru
      _
    %v46 = vld [vmem:[#allocation3] sm:$0xff]
    %v47 = vld [vmem:[%s1] sm:$0x1]
    %v49 = vlaneseq
    %v50 = vshrl.u32 %v49, 7
    %v51 = vsub.s32 0, %v50
    %v52 = vrot.slane %v47, %v51
    %v54 = vsub.f32 %v46, %v52
    %v55 = vand.u32 2147483647, %v54
    %v56 = vsub.f32 0.0, %v55
    %v57 = vmul.f32 %v56, 3.5
    %v58 = vmul.f32 %v57, 1.442695
    %v59 = vpow.pop %v58
    %v60 = vld [vmem:[#allocation2] sm:$0xff]
    %v61 = vld [vmem:[#allocation6] sm:$0xff]
    %v62 = vld [vmem:[#allocation6 + $0x8] sm:$0xff]
    %v63 = vld [vmem:[#allocation6 + $0x10] sm:$0xff]
    %v64 = vld [vmem:[#allocation6 + $0x18] sm:$0xff]
    %v65 = vld [vmem:[#allocation6 + $0x20] sm:$0xff]
    %v66 = vld [vmem:[#allocation6 + $0x28] sm:$0xff]
    %v67 = vld [vmem:[#allocation6 + $0x30] sm:$0xff]
    %v68 = vld [vmem:[#allocation6 + $0x38] sm:$0xff]
    %v69 = vld [vmem:[#allocation6 + $0x40] sm:$0xff]
    %v70 = vld [vmem:[#allocation6 + $0x48] sm:$0xff]
    %v71 = vld [vmem:[#allocation6 + $0x50] sm:$0xff]
    %v72 = vld [vmem:[#allocation6 + $0x58] sm:$0xff]
    %v73 = vld [vmem:[#allocation6 + $0x60] sm:$0xff]
    %v74 = vld [vmem:[#allocation6 + $0x68] sm:$0xff]
    %v75 = vld [vmem:[#allocation6 + $0x70] sm:$0xff]
    %v76 = vld [vmem:[#allocation6 + $0x78] sm:$0xff]
    %77 = vmatprep.subr.mxu0 0.0
    %78 = vmatpush1.msra.mxu0 %v61
    %79 = vmatprep.subr.mxu0 0.0
    %80 = vmatpush1.msra.mxu0 %v62
    %81 = vmatprep.subr.mxu0 0.0
    %82 = vmatpush1.msra.mxu0 %v63
    %83 = vmatprep.subr.mxu0 0.0
    %84 = vmatpush1.msra.mxu0 %v64
    %85 = vmatprep.subr.mxu0 0.0
    %86 = vmatpush1.msra.mxu0 %v65
    %87 = vmatprep.subr.mxu0 0.0
    %88 = vmatpush1.msra.mxu0 %v66
    %89 = vmatprep.subr.mxu0 0.0
    %90 = vmatpush1.msra.mxu0 %v67
    %91 = vmatprep.subr.mxu0 0.0
    %92 = vmatpush1.msra.mxu0 %v68
    %93 = vmatprep.subr.mxu0 0.0
    %94 = vmatpush1.msra.mxu0 %v69
    %95 = vmatprep.subr.mxu0 0.0
    %96 = vmatpush1.msra.mxu0 %v70
    %97 = vmatprep.subr.mxu0 0.0
    %98 = vmatpush1.msra.mxu0 %v71
    %99 = vmatprep.subr.mxu0 0.0
    %100 = vmatpush1.msra.mxu0 %v72
    %101 = vmatprep.subr.mxu0 0.0
    %102 = vmatpush1.msra.mxu0 %v73
    %103 = vmatprep.subr.mxu0 0.0
    %104 = vmatpush1.msra.mxu0 %v74
    %105 = vmatprep.subr.mxu0 0.0
    %106 = vmatpush1.msra.mxu0 %v75
    %107 = vmatprep.subr.mxu0 0.0
    %108 = vmatpush1.msra.mxu0 %v76
    %109 = vmatprep.subr.mxu0 0.0
    %110 = vmatpush1.msra.mxu0 0.0
    %111 = vmatprep.subr.mxu0 0.0
    %112 = vmatpush1.msra.mxu0 0.0
    %113 = vmatprep.subr.mxu0 0.0
    %114 = vmatpush1.msra.mxu0 0.0
    %115 = vmatprep.subr.mxu0 0.0
    %116 = vmatpush1.msra.mxu0 0.0
    %117 = vmatprep.subr.mxu0 0.0
    %118 = vmatpush1.msra.mxu0 0.0
    %119 = vmatprep.subr.mxu0 0.0
    %120 = vmatpush1.msra.mxu0 0.0
    %121 = vmatprep.subr.mxu0 0.0
    %122 = vmatpush1.msra.mxu0 0.0
    %123 = vmatprep.subr.mxu0 0.0
    %124 = vmatpush1.msra.mxu0 0.0
    %125 = vmatprep.subr.mxu0 0.0
    %126 = vmatpush1.msra.mxu0 0.0
    %127 = vmatprep.subr.mxu0 0.0
    %128 = vmatpush1.msra.mxu0 0.0
    %129 = vmatprep.subr.mxu0 0.0
    %130 = vmatpush1.msra.mxu0 0.0
    %131 = vmatprep.subr.mxu0 0.0
    %132 = vmatpush1.msra.mxu0 0.0
    %133 = vmatprep.subr.mxu0 0.0
    %134 = vmatpush1.msra.mxu0 0.0
    %135 = vmatprep.subr.mxu0 0.0
    %136 = vmatpush1.msra.mxu0 0.0
    %137 = vmatprep.subr.mxu0 0.0
    %138 = vmatpush1.msra.mxu0 0.0
    %139 = vmatprep.subr.mxu0 0.0
    %140 = vmatpush1.msra.mxu0 0.0
    %141 = vmatprep.mubr.f32.mxu0 0.0
    %142 = vmatmul.mubr.f32.gmra.mrb[0].mxu0 %v59
    %v143 = vpop.f32.mrb[0].mxu0
    %v144 = vadd.f32 0.0, %v143
    %v145 = vpop.f32.mrb[0].mxu0
    %146 = vdwg.mxu0
    %v147 = vadd.f32 %v60, %v144
    %148 = vst [vmem:[#allocation2] sm:$0xff] %v147
    // Predicated region
    $region26: #{tpu_custom_call.1} parent=1 // pred_check
      %p149 = pneg %p41
    $region27: #{tpu_custom_call.1} parent=1 // pred_check_branch
      %151 = sbr.rel (%p149) target = $region29
    $region28: #{tpu_custom_call.1} parent=1 // pred_region
      %v152 = vld [vmem:[#allocation2] sm:$0xff]
      %153 = vst [vmem:[#allocation8] sm:$0xff] %v152
    $region29: #{tpu_custom_call.1} parent=1 // pred_fallthru
      _
    // Predicated region
    $region30: #{tpu_custom_call.1} parent=1 // pred_check
      _
    $region31: #{tpu_custom_call.1} parent=1 // pred_check_branch
      %155 = sbr.rel (0) target = $region33
    $region32: #{tpu_custom_call.1} parent=1 // pred_region
      %s157 = ssub.s32 128, 128
      %158 = vsyncadd [#allocation5], %s157
      %s160 = sshll.u32 [#allocation8], 4
      %s161 = int_to_ptr.vmem [resolvable:$true] %s160
      %163 = dma.vmem_to_hbm [thread:$0]  %s161, 128, %s3, [#allocation5]
    $region33: #{tpu_custom_call.1} parent=1 // pred_fallthru
      _
    // Predicated region
    $region34: #{tpu_custom_call.1} parent=1 // pred_check
      _
    $region35: #{tpu_custom_call.1} parent=1 // pred_check_branch
      %165 = sbr.rel (0) target = $region37
    $region36: #{tpu_custom_call.1} parent=1 // pred_region
      %166 = dma.done [#allocation5], 128
    $region37: #{tpu_custom_call.1} parent=1 // pred_fallthru
      _
    %167 = vsyncpa [#allocation4], 1
    %168 = vsyncpa [#allocation7], 1
    %169 = vsyncpa [#allocation5], 1

</llo_original>
